<compile_context>
chip_gen: v6e
topology: v6e:2x2x1
jax: 0.10.0
libtpu: 0.0.40
codegen_flags: <defaults>
</compile_context>

<pallas_src>
import functools

import jax
import jax.numpy as jnp
from jax import lax
from jax.experimental import pallas as pl
from jax.experimental.pallas import tpu as pltpu

LANE = 128


def _round_up(x, m):
    return (x + m - 1) // m * m


# ----------------------------------------------------------------------------
# Fused kernel: one (batch n, L-tile j) block per grid step.
#   x_ref   : (1, TL, Cinp)          input tile (channels-last, lane-padded)
#   w1d_ref : (K*Cinp, 2*Coutp)      conv1 taps (cols [0,Coutp)) + 1x1 downsample
#                                    (cols [Coutp,2Coutp), rows of tap K-1 block)
#   b1d_ref : (1, 2*Coutp)           [b1 | bd]
#   w2_ref  : (K*Coutp, Coutp)       conv2 taps
#   b2_ref  : (1, Coutp)
#   o_ref   : (1, TL, Coutp)
#   x_buf   : VMEM (TL+P, Cinp)      rows [0:P) = causal halo carried across L-tiles
#   h1_buf  : VMEM (TL+P, Coutp)     same layout for the conv1 output
# ----------------------------------------------------------------------------
def _temporal_block_kernel(x_ref, w1d_ref, b1d_ref, w2_ref, b2_ref, o_ref,
                           x_buf, h1_buf, *, K, dilation, TL, P, Coutp, unroll_taps):
    Cinp = x_buf.shape[1]
    j = pl.program_id(1)

    if P > 0:
        # First L-tile of each batch element: causal left-padding == zero halo.
        @pl.when(j == 0)
        def _init_halo():
            x_buf[0:P, :] = jnp.zeros((P, Cinp), x_buf.dtype)
            h1_buf[0:P, :] = jnp.zeros((P, Coutp), h1_buf.dtype)

    x_tile = x_ref[0].astype(x_buf.dtype)               # (TL, Cinp)
    if P > 0:
        x_buf[P:P + TL, :] = x_tile                     # tap K-1 window == x_tile

    # ---- conv1 (+ fused 1x1 downsample) ----
    if unroll_taps:
        # v5e path: no im2col slab stores; K accumulating dots (contraction = Cinp).
        fused = jnp.dot(x_tile, w1d_ref[(K - 1) * Cinp:K * Cinp, :],
                        preferred_element_type=jnp.float32)        # tap K-1 + wd cols
        h1pre = fused[:, 0:Coutp]
        res = fused[:, Coutp:2 * Coutp]
        for k in range(K - 1):
            h1pre = h1pre + jnp.dot(
                x_buf[k * dilation:k * dilation + TL, :],
                w1d_ref[k * Cinp:(k + 1) * Cinp, 0:Coutp],
                preferred_element_type=jnp.float32)
        h1 = jnp.maximum(h1pre + b1d_ref[:, 0:Coutp], 0.0)
        res = res + b1d_ref[:, Coutp:2 * Coutp]
    else:
        # v6e/v7x path: one wide MXU contraction (K*Cinp deep, 2*Coutp wide).
        chunks = [x_buf[k * dilation:k * dilation + TL, :] for k in range(K - 1)]
        chunks.append(x_tile)                            # tap K-1: reuse, no reload
        slab1 = jnp.concatenate(chunks, axis=1)          # (TL, K*Cinp)
        fused = jnp.dot(slab1, w1d_ref[...],
                        preferred_element_type=jnp.float32) + b1d_ref[...]
        h1 = jnp.maximum(fused[:, 0:Coutp], 0.0)         # conv1 + ReLU
        res = fused[:, Coutp:2 * Coutp]                  # 1x1 downsample + bias
    # dropout1: identity (eval mode)

    h1_c = h1.astype(h1_buf.dtype)
    if P > 0:
        h1_buf[P:P + TL, :] = h1_c

    # ---- conv2 + ReLU (h1 never leaves VMEM) ----
    if unroll_taps:
        h2 = jnp.dot(h1_c, w2_ref[(K - 1) * Coutp:K * Coutp, :],
                     preferred_element_type=jnp.float32)
        for k in range(K - 1):
            h2 = h2 + jnp.dot(
                h1_buf[k * dilation:k * dilation + TL, :],
                w2_ref[k * Coutp:(k + 1) * Coutp, :],
                preferred_element_type=jnp.float32)
    else:
        chunks2 = [h1_buf[k * dilation:k * dilation + TL, :] for k in range(K - 1)]
        chunks2.append(h1_c)
        slab2 = jnp.concatenate(chunks2, axis=1)         # (TL, K*Coutp)
        h2 = jnp.dot(slab2, w2_ref[...], preferred_element_type=jnp.float32)
    h2 = jnp.maximum(h2 + b2_ref[...], 0.0)
    # dropout2: identity (eval mode)

    # residual add + final ReLU
    o_ref[0] = jnp.maximum(h2 + res, 0.0).astype(o_ref.dtype)

    # Carry the last P rows of x and h1 into the halo for the next L-tile
    # (skipped on the last tile — nothing will consume it).
    if P > 0:
        @pl.when(j < pl.num_programs(1) - 1)
        def _carry():
            x_buf[0:P, :] = x_buf[TL:TL + P, :]
            h1_buf[0:P, :] = h1_buf[TL:TL + P, :]


# ----------------------------------------------------------------------------
# Glue: weight_norm reparameterization + forward wrappers.
# ----------------------------------------------------------------------------
def weight_norm_reparam(v, g):
    """torch weight_norm with dim=0: w = g * v / ||v|| (norm over all dims but 0)."""
    norm = jnp.sqrt(jnp.sum(v * v, axis=(1, 2), keepdims=True))
    return g.reshape(-1, 1, 1) * v / norm


def temporal_block_forward_nlc(x_nlc, params, *, dilation, l_tile_target=1024,
                               compute_dtype=jnp.bfloat16, out_dtype=None,
                               unroll_taps=False):
    """Channels-last forward. x_nlc: (N, L, Cin) -> (N, L, Cout).

    Use this entry point for stacked TCN blocks so activations stay (N, L, C)
    and no NCL<->NLC transposes are paid between layers.
    compute_dtype: bf16 for production on v5e/v6e/v7x (f32 accumulation either way).
    unroll_taps:   True on v5e (avoids im2col slab stores); False on v6e/v7x.
    """
    if out_dtype is None:
        out_dtype = compute_dtype

    w1 = weight_norm_reparam(params["v1"], params["g1"])
    w2 = weight_norm_reparam(params["v2"], params["g2"])
    N, L, Cin = x_nlc.shape
    Cout, _, K = w1.shape
    P = (K - 1) * dilation

    if params.get("wd") is not None:
        wd = params["wd"][:, :, 0]                       # (Cout, Cin), 1x1 downsample
        bd = params["bd"]
    else:
        # n_inputs == n_outputs: module uses res = x  -> identity 1x1, zero bias.
        assert Cin == Cout, "identity residual requires n_inputs == n_outputs"
        wd = jnp.eye(Cout, dtype=jnp.float32)
        bd = jnp.zeros((Cout,), jnp.float32)

    # Lane-dense channel padding (no-op when C is already a multiple of 128).
    Cinp = _round_up(Cin, LANE)
    Coutp = _round_up(Cout, LANE)

    # L tiling: TL multiple of 8, TL >= P (single-tile causal halo), pad L up to a
    # multiple of TL with trailing zeros (causal conv -> real outputs unaffected).
    TL = min(_round_up(l_tile_target, 8), _round_up(L, 8))
    TL = max(TL, _round_up(P, 8))
    Lp = _round_up(L, TL)
    assert TL % 8 == 0 and Lp % TL == 0 and P <= TL

    x_p = jnp.pad(x_nlc, ((0, 0), (0, Lp - L), (0, Cinp - Cin))).astype(compute_dtype)

    # Tap-major conv weights; causal convention: tap k of the flattened contraction
    # reads buffer offset k*dilation, and tap K-1 aligns with the un-shifted x_tile.
    def tapmajor(w, cin, cinp):
        wk = jnp.transpose(w, (2, 1, 0))                 # (K, cin, Cout)
        wk = jnp.pad(wk, ((0, 0), (0, cinp - cin), (0, Coutp - Cout)))
        return wk.reshape(K * cinp, Coutp)

    w1_flat = tapmajor(w1, Cin, Cinp)
    # Downsample columns: nonzero only in the tap-(K-1) row block (aligned with x[t]).
    wd_cols = jnp.zeros((K * Cinp, Coutp), jnp.float32).at[(K - 1) * Cinp:, :].set(
        jnp.pad(wd.T, ((0, Cinp - Cin), (0, Coutp - Cout))))
    w1d = jnp.concatenate([w1_flat, wd_cols], axis=1).astype(compute_dtype)
    w2_flat = tapmajor(w2, Cout, Coutp).astype(compute_dtype)

    def padb(b):
        return jnp.pad(b, (0, Coutp - Cout)).astype(jnp.float32)

    b1d = jnp.concatenate([padb(params["b1"]), padb(bd)]).reshape(1, 2 * Coutp)
    b2 = padb(params["b2"]).reshape(1, Coutp)

    # VMEM budget from the actual per-step footprint (+50% margin), not a flat constant.
    ci = jnp.dtype(compute_dtype).itemsize
    oi = jnp.dtype(out_dtype).itemsize
    need = (2 * TL * Cinp * ci                           # x tile (double-buffered)
            + 2 * TL * Coutp * oi                        # out tile (double-buffered)
            + (K * Cinp * 2 * Coutp + K * Coutp * Coutp) * ci + 3 * Coutp * 4
            + (TL + P) * (Cinp + Coutp) * ci             # halo scratch
            + TL * K * (Cinp + Coutp) * ci)              # im2col slabs
    vmem_limit = int(min(max(need + need // 2, 32 << 20), 128 << 20))

    kern = functools.partial(_temporal_block_kernel, K=K, dilation=dilation,
                             TL=TL, P=P, Coutp=Coutp, unroll_taps=unroll_taps)

    # Constant operands are identical at every grid step -> single-buffered.
    def const_spec(shape):
        return pl.BlockSpec(shape, lambda n, j: (0, 0), pipeline_mode=pl.Buffered(1))

    y = pl.pallas_call(
        kern,
        out_shape=jax.ShapeDtypeStruct((N, Lp, Coutp), out_dtype),
        grid=(N, Lp // TL),
        in_specs=[
            pl.BlockSpec((1, TL, Cinp), lambda n, j: (n, j, 0)),
            const_spec((K * Cinp, 2 * Coutp)),
            const_spec((1, 2 * Coutp)),
            const_spec((K * Coutp, Coutp)),
            const_spec((1, Coutp)),
        ],
        out_specs=pl.BlockSpec((1, TL, Coutp), lambda n, j: (n, j, 0)),
        scratch_shapes=[
            pltpu.VMEM((TL + P, Cinp), compute_dtype),   # x halo + current tile
            pltpu.VMEM((TL + P, Coutp), compute_dtype),  # h1 halo + current tile
        ],
        compiler_params=pltpu.CompilerParams(
            # N independent (megacore-shardable); L carries the halo scratch, so it
            # must iterate sequentially per batch element -> "arbitrary".
            dimension_semantics=("parallel", "arbitrary"),
            vmem_limit_bytes=vmem_limit,
        ),
    )(x_p, w1d, b1d, w2_flat, b2)

    return y[:, :L, :Cout]


def temporal_block_forward(x_ncl, params, *, dilation, l_tile_target=1024,
                           compute_dtype=jnp.bfloat16, out_dtype=None,
                           unroll_taps=False):
    """PyTorch-layout forward: x_ncl (N, Cin, L) -> (N, Cout, L).

    Only use at the model boundary; stacked blocks should call the _nlc variant
    to avoid paying the two HBM transposes per layer.
    """
    x_nlc = jnp.transpose(x_ncl, (0, 2, 1))
    y = temporal_block_forward_nlc(x_nlc, params, dilation=dilation,
                                   l_tile_target=l_tile_target,
                                   compute_dtype=compute_dtype, out_dtype=out_dtype,
                                   unroll_taps=unroll_taps)
    return jnp.transpose(y, (0, 2, 1))


# ----------------------------------------------------------------------------
# Pure-JAX reference (lax.conv_general_dilated) to validate semantics.
# ----------------------------------------------------------------------------
def _ref_conv1d(x_ncl, w_oik, b, *, padding, dilation):
    y = lax.conv_general_dilated(
        x_ncl, w_oik, window_strides=(1,), padding=[(padding, padding)],
        rhs_dilation=(dilation,), dimension_numbers=("NCH", "OIH", "NCH"),
        precision=lax.Precision.HIGHEST)
    return y + b.reshape(1, -1, 1)


def reference_forward(x_ncl, params, *, dilation, padding):
    w1 = weight_norm_reparam(params["v1"], params["g1"])
    w2 = weight_norm_reparam(params["v2"], params["g2"])

    def chomp(h):
        return h if padding == 0 else h[:, :, :-padding]

    h = jnp.maximum(chomp(_ref_conv1d(x_ncl, w1, params["b1"],
                                      padding=padding, dilation=dilation)), 0.0)
    h = jnp.maximum(chomp(_ref_conv1d(h, w2, params["b2"],
                                      padding=padding, dilation=dilation)), 0.0)
    if params.get("wd") is not None:
        res = _ref_conv1d(x_ncl, params["wd"], params["bd"], padding=0, dilation=1)
    else:
        res = x_ncl
    return jnp.maximum(h + res, 0.0)


if __name__ == "__main__":
    # Module hyperparameters (small, consistent with the PyTorch module).
    N, Cin, L = 2, 4, 16
    Cout = 8
    K = 4                            # args_kernel_size
    dilation = 2
    padding = (K - 1) * dilation     # causal padding used in a TCN

    key = jax.random.PRNGKey(0)
    k_x, k_v1, k_b1, k_v2, k_b2, k_wd, k_bd = jax.random.split(key, 7)

    x = jax.random.normal(k_x, (N, Cin, L), jnp.float32)

    v1 = 0.01 * jax.random.normal(k_v1, (Cout, Cin, K), jnp.float32)
    v2 = 0.01 * jax.random.normal(k_v2, (Cout, Cout, K), jnp.float32)
    params = {
        "v1": v1,
        "g1": jnp.sqrt(jnp.sum(v1 * v1, axis=(1, 2))),   # weight_norm g (init = ||v||)
        "b1": 0.1 * jax.random.normal(k_b1, (Cout,), jnp.float32),
        "v2": v2,
        "g2": jnp.sqrt(jnp.sum(v2 * v2, axis=(1, 2))),
        "b2": 0.1 * jax.random.normal(k_b2, (Cout,), jnp.float32),
        "wd": 0.01 * jax.random.normal(k_wd, (Cout, Cin, 1), jnp.float32),
        "bd": 0.1 * jax.random.normal(k_bd, (Cout,), jnp.float32),
    }

    ref = reference_forward(x, params, dilation=dilation, padding=padding)

    # 1) f32 compute, fused im2col-slab path (v6e/v7x structure): tight check.
    out = temporal_block_forward(x, params, dilation=dilation,
                                 compute_dtype=jnp.float32)
    out = jax.block_until_ready(out)
    assert out.shape == (N, Cout, L)
    assert jnp.allclose(out, ref, rtol=1e-3, atol=1e-6), "f32 slab path mismatch"

    # 2) f32 compute, unrolled-tap path (v5e structure): tight check.
    out_u = temporal_block_forward(x, params, dilation=dilation,
                                   compute_dtype=jnp.float32, unroll_taps=True)
    out_u = jax.block_until_ready(out_u)
    assert jnp.allclose(out_u, ref, rtol=1e-3, atol=1e-6), "f32 unrolled path mismatch"

    # 3) production path: bf16 compute + bf16 writeback, f32 accumulation.
    out_bf = temporal_block_forward(x, params, dilation=dilation)
    out_bf = jax.block_until_ready(out_bf)
    assert out_bf.shape == (N, Cout, L) and out_bf.dtype == jnp.bfloat16
    assert float(jnp.max(jnp.abs(out_bf.astype(jnp.float32) - ref))) < 5e-2, \
        "bf16 sanity check failed"

    # 4) identity-residual branch (n_inputs == n_outputs -> downsample is None).
    x_id = jax.random.normal(k_x, (N, Cout, L), jnp.float32)
    v1i = 0.01 * jax.random.normal(k_v1, (Cout, Cout, K), jnp.float32)
    params_id = {
        "v1": v1i, "g1": jnp.sqrt(jnp.sum(v1i * v1i, axis=(1, 2))),
        "b1": params["b1"], "v2": v2, "g2": params["g2"], "b2": params["b2"],
    }
    ref_id = reference_forward(x_id, params_id, dilation=dilation, padding=padding)
    out_id = temporal_block_forward(x_id, params_id, dilation=dilation,
                                    compute_dtype=jnp.float32)
    out_id = jax.block_until_ready(out_id)
    assert jnp.allclose(out_id, ref_id, rtol=1e-3, atol=1e-6), "identity residual mismatch"

    print("KERNEL_OK")
</pallas_src>

<mosaic_0001>
module attributes {stable_mosaic.version = 11 : i64} {
  func.func @_temporal_block_kernel(%arg0: i32, %arg1: i32, %arg2: memref<1x16x128xf32, #tpu.memory_space<vmem>>, %arg3: memref<512x256xf32, #tpu.memory_space<vmem>>, %arg4: memref<1x256xf32, #tpu.memory_space<vmem>>, %arg5: memref<512x128xf32, #tpu.memory_space<vmem>>, %arg6: memref<1x128xf32, #tpu.memory_space<vmem>>, %arg7: memref<1x16x128xf32, #tpu.memory_space<vmem>>, %arg8: memref<22x128xf32, #tpu.memory_space<vmem>>, %arg9: memref<22x128xf32, #tpu.memory_space<vmem>>) attributes {dimension_semantics = [#tpu.dimension_semantics<parallel>, #tpu.dimension_semantics<arbitrary>], iteration_bounds = array<i64: 2, 1>, scalar_prefetch = 0 : i64, scratch_operands = 2 : i64, tpu.core_type = #tpu.core_type<tc>, window_params = [{transform_indices = @transform_0, window_bounds = array<i64: 1, 16, 128>}, {pipeline_mode = #tpu.pipeline_mode<synchronous>, transform_indices = @transform_1, window_bounds = array<i64: 512, 256>}, {pipeline_mode = #tpu.pipeline_mode<synchronous>, transform_indices = @transform_2, window_bounds = array<i64: 1, 256>}, {pipeline_mode = #tpu.pipeline_mode<synchronous>, transform_indices = @transform_3, window_bounds = array<i64: 512, 128>}, {pipeline_mode = #tpu.pipeline_mode<synchronous>, transform_indices = @transform_4, window_bounds = array<i64: 1, 128>}, {transform_indices = @transform_5, window_bounds = array<i64: 1, 16, 128>}]} {
    %c0_i32 = arith.constant 0 : i32
    %0 = arith.cmpi eq, %arg1, %c0_i32 : i32
    %1 = arith.extui %0 : i1 to i32
    %c0_i32_0 = arith.constant 0 : i32
    %2 = arith.cmpi ne, %1, %c0_i32_0 : i32
    scf.if %2 {
      %cst_33 = arith.constant 0.000000e+00 : f32
      %40 = vector.broadcast %cst_33 : f32 to vector<6x128xf32>
      %c0_34 = arith.constant 0 : index
      %c0_35 = arith.constant 0 : index
      %41 = vector.load %arg8[%c0_34, %c0_35] : memref<22x128xf32, #tpu.memory_space<vmem>>, vector<6x128xf32>
      tpu.vector_store %arg8[%c0_34, %c0_35], %40 {strides = array<i32>} : memref<22x128xf32, #tpu.memory_space<vmem>>, vector<6x128xf32>,
      %cst_36 = arith.constant 0.000000e+00 : f32
      %42 = vector.broadcast %cst_36 : f32 to vector<6x128xf32>
      %c0_37 = arith.constant 0 : index
      %c0_38 = arith.constant 0 : index
      %43 = vector.load %arg9[%c0_37, %c0_38] : memref<22x128xf32, #tpu.memory_space<vmem>>, vector<6x128xf32>
      tpu.vector_store %arg9[%c0_37, %c0_38], %42 {strides = array<i32>} : memref<22x128xf32, #tpu.memory_space<vmem>>, vector<6x128xf32>,
    } else {
    }
    %c0 = arith.constant 0 : index
    %c0_1 = arith.constant 0 : index
    %c0_2 = arith.constant 0 : index
    %3 = vector.load %arg2[%c0, %c0_1, %c0_2] : memref<1x16x128xf32, #tpu.memory_space<vmem>>, vector<1x16x128xf32>
    %4 = vector.shape_cast %3 : vector<1x16x128xf32> to vector<16x128xf32>
    %c6 = arith.constant 6 : index
    %c0_3 = arith.constant 0 : index
    %5 = vector.load %arg8[%c6, %c0_3] : memref<22x128xf32, #tpu.memory_space<vmem>>, vector<16x128xf32>
    tpu.vector_store %arg8[%c6, %c0_3], %4 {strides = array<i32>} : memref<22x128xf32, #tpu.memory_space<vmem>>, vector<16x128xf32>,
    %c0_4 = arith.constant 0 : index
    %c0_5 = arith.constant 0 : index
    %6 = vector.load %arg8[%c0_4, %c0_5] : memref<22x128xf32, #tpu.memory_space<vmem>>, vector<16x128xf32>
    %c2 = arith.constant 2 : index
    %c0_6 = arith.constant 0 : index
    %7 = vector.load %arg8[%c2, %c0_6] : memref<22x128xf32, #tpu.memory_space<vmem>>, vector<16x128xf32>
    %c4 = arith.constant 4 : index
    %c0_7 = arith.constant 0 : index
    %8 = vector.load %arg8[%c4, %c0_7] : memref<22x128xf32, #tpu.memory_space<vmem>>, vector<16x128xf32>
    %9 = tpu.concatenate %6, %7, %8, %4 in 1 : vector<16x128xf32>, vector<16x128xf32>, vector<16x128xf32>, vector<16x128xf32> -> vector<16x512xf32>
    %c0_8 = arith.constant 0 : index
    %c0_9 = arith.constant 0 : index
    %10 = vector.load %arg3[%c0_8, %c0_9] : memref<512x256xf32, #tpu.memory_space<vmem>>, vector<512x256xf32>
    %cst = arith.constant dense<0.000000e+00> : vector<16x256xf32>
    %11 = tpu.matmul %9, %10, %cst {dimension_numbers = #tpu.dot_dimension_numbers<[1], [0], [0], [1], [0, 0, 1, 1], [], []>} : vector<16x512xf32>, vector<512x256xf32>, vector<16x256xf32> -> vector<16x256xf32>
    %c0_10 = arith.constant 0 : index
    %c0_11 = arith.constant 0 : index
    %12 = vector.load %arg4[%c0_10, %c0_11] : memref<1x256xf32, #tpu.memory_space<vmem>>, vector<1x256xf32>
    %13 = vector.broadcast %12 : vector<1x256xf32> to vector<16x256xf32>
    %14 = arith.addf %11, %13 : vector<16x256xf32>
    %15 = vector.extract_strided_slice %14 {offsets = [0, 0], sizes = [16, 128], strides = [1, 1]} : vector<16x256xf32> to vector<16x128xf32>
    %cst_12 = arith.constant 0.000000e+00 : f32
    %16 = vector.broadcast %cst_12 : f32 to vector<16x128xf32>
    %17 = arith.maximumf %15, %16 : vector<16x128xf32>
    %18 = vector.extract_strided_slice %14 {offsets = [0, 128], sizes = [16, 128], strides = [1, 1]} : vector<16x256xf32> to vector<16x128xf32>
    %c6_13 = arith.constant 6 : index
    %c0_14 = arith.constant 0 : index
    %19 = vector.load %arg9[%c6_13, %c0_14] : memref<22x128xf32, #tpu.memory_space<vmem>>, vector<16x128xf32>
    tpu.vector_store %arg9[%c6_13, %c0_14], %17 {strides = array<i32>} : memref<22x128xf32, #tpu.memory_space<vmem>>, vector<16x128xf32>,
    %c0_15 = arith.constant 0 : index
    %c0_16 = arith.constant 0 : index
    %20 = vector.load %arg9[%c0_15, %c0_16] : memref<22x128xf32, #tpu.memory_space<vmem>>, vector<16x128xf32>
    %c2_17 = arith.constant 2 : index
    %c0_18 = arith.constant 0 : index
    %21 = vector.load %arg9[%c2_17, %c0_18] : memref<22x128xf32, #tpu.memory_space<vmem>>, vector<16x128xf32>
    %c4_19 = arith.constant 4 : index
    %c0_20 = arith.constant 0 : index
    %22 = vector.load %arg9[%c4_19, %c0_20] : memref<22x128xf32, #tpu.memory_space<vmem>>, vector<16x128xf32>
    %23 = tpu.concatenate %20, %21, %22, %17 in 1 : vector<16x128xf32>, vector<16x128xf32>, vector<16x128xf32>, vector<16x128xf32> -> vector<16x512xf32>
    %c0_21 = arith.constant 0 : index
    %c0_22 = arith.constant 0 : index
    %24 = vector.load %arg5[%c0_21, %c0_22] : memref<512x128xf32, #tpu.memory_space<vmem>>, vector<512x128xf32>
    %cst_23 = arith.constant dense<0.000000e+00> : vector<16x128xf32>
    %25 = tpu.matmul %23, %24, %cst_23 {dimension_numbers = #tpu.dot_dimension_numbers<[1], [0], [0], [1], [0, 0, 1, 1], [], []>} : vector<16x512xf32>, vector<512x128xf32>, vector<16x128xf32> -> vector<16x128xf32>
    %c0_24 = arith.constant 0 : index
    %c0_25 = arith.constant 0 : index
    %26 = vector.load %arg6[%c0_24, %c0_25] : memref<1x128xf32, #tpu.memory_space<vmem>>, vector<1x128xf32>
    %27 = vector.broadcast %26 : vector<1x128xf32> to vector<16x128xf32>
    %28 = arith.addf %25, %27 : vector<16x128xf32>
    %cst_26 = arith.constant 0.000000e+00 : f32
    %29 = vector.broadcast %cst_26 : f32 to vector<16x128xf32>
    %30 = arith.maximumf %28, %29 : vector<16x128xf32>
    %31 = arith.addf %30, %18 : vector<16x128xf32>
    %cst_27 = arith.constant 0.000000e+00 : f32
    %32 = vector.broadcast %cst_27 : f32 to vector<16x128xf32>
    %33 = arith.maximumf %31, %32 : vector<16x128xf32>
    %c0_28 = arith.constant 0 : index
    %c0_29 = arith.constant 0 : index
    %c0_30 = arith.constant 0 : index
    %34 = vector.load %arg7[%c0_28, %c0_29, %c0_30] : memref<1x16x128xf32, #tpu.memory_space<vmem>>, vector<1x16x128xf32>
    %35 = vector.shape_cast %34 : vector<1x16x128xf32> to vector<16x128xf32>
    %36 = vector.shape_cast %33 : vector<16x128xf32> to vector<1x16x128xf32>
    tpu.vector_store %arg7[%c0_28, %c0_29, %c0_30], %36 {strides = array<i32>} : memref<1x16x128xf32, #tpu.memory_space<vmem>>, vector<1x16x128xf32>,
    %c0_i32_31 = arith.constant 0 : i32
    %37 = arith.cmpi slt, %arg1, %c0_i32_31 : i32
    %38 = arith.extui %37 : i1 to i32
    %c0_i32_32 = arith.constant 0 : i32
    %39 = arith.cmpi ne, %38, %c0_i32_32 : i32
    scf.if %39 {
      %c16 = arith.constant 16 : index
      %c0_33 = arith.constant 0 : index
      %40 = vector.load %arg8[%c16, %c0_33] : memref<22x128xf32, #tpu.memory_space<vmem>>, vector<6x128xf32>
      %c0_34 = arith.constant 0 : index
      %c0_35 = arith.constant 0 : index
      %41 = vector.load %arg8[%c0_34, %c0_35] : memref<22x128xf32, #tpu.memory_space<vmem>>, vector<6x128xf32>
      tpu.vector_store %arg8[%c0_34, %c0_35], %40 {strides = array<i32>} : memref<22x128xf32, #tpu.memory_space<vmem>>, vector<6x128xf32>,
      %c16_36 = arith.constant 16 : index
      %c0_37 = arith.constant 0 : index
      %42 = vector.load %arg9[%c16_36, %c0_37] : memref<22x128xf32, #tpu.memory_space<vmem>>, vector<6x128xf32>
      %c0_38 = arith.constant 0 : index
      %c0_39 = arith.constant 0 : index
      %43 = vector.load %arg9[%c0_38, %c0_39] : memref<22x128xf32, #tpu.memory_space<vmem>>, vector<6x128xf32>
      tpu.vector_store %arg9[%c0_38, %c0_39], %42 {strides = array<i32>} : memref<22x128xf32, #tpu.memory_space<vmem>>, vector<6x128xf32>,
    } else {
    }
    return
  }
  func.func @transform_0(%arg0: i32, %arg1: i32) -> (i32, i32, i32) {
    %c0_i32 = arith.constant 0 : i32
    %c0_i32_0 = arith.constant 0 : i32
    return %arg0, %arg1, %c0_i32 : i32, i32, i32
  }
  func.func @transform_1(%arg0: i32, %arg1: i32) -> (i32, i32) {
    %c0_i32 = arith.constant 0 : i32
    %c0_i32_0 = arith.constant 0 : i32
    %c0_i32_1 = arith.constant 0 : i32
    return %c0_i32, %c0_i32_0 : i32, i32
  }
  func.func @transform_2(%arg0: i32, %arg1: i32) -> (i32, i32) {
    %c0_i32 = arith.constant 0 : i32
    %c0_i32_0 = arith.constant 0 : i32
    %c0_i32_1 = arith.constant 0 : i32
    return %c0_i32, %c0_i32_0 : i32, i32
  }
  func.func @transform_3(%arg0: i32, %arg1: i32) -> (i32, i32) {
    %c0_i32 = arith.constant 0 : i32
    %c0_i32_0 = arith.constant 0 : i32
    %c0_i32_1 = arith.constant 0 : i32
    return %c0_i32, %c0_i32_0 : i32, i32
  }
  func.func @transform_4(%arg0: i32, %arg1: i32) -> (i32, i32) {
    %c0_i32 = arith.constant 0 : i32
    %c0_i32_0 = arith.constant 0 : i32
    %c0_i32_1 = arith.constant 0 : i32
    return %c0_i32, %c0_i32_0 : i32, i32
  }
  func.func @transform_5(%arg0: i32, %arg1: i32) -> (i32, i32, i32) {
    %c0_i32 = arith.constant 0 : i32
    %c0_i32_0 = arith.constant 0 : i32
    return %arg0, %arg1, %c0_i32 : i32, i32, i32
  }
}

</mosaic_0001>

<llo_original>
// kernel: tpu_custom_call.1
$region0: #{tpu_custom_call.1}
  #allocation0 [shape = 'u32[]', space=smem, size = 0x4, offset = 0x4, fixed_abs, tag = 'smem constant byte address 0x4 - core index']
  #allocation1 [shape = 'u32[144,128]{1,0:T(1,128)}', space=vmem, size = 0x12000, scoped, tag = 'internal scratch']
  #allocation2 [shape = 'f32[22,128]{1,0:T(8,128)}', space=vmem, size = 0x3000, scoped, tag = 'scratch operand']
  #allocation3 [shape = 'f32[22,128]{1,0:T(8,128)}', space=vmem, size = 0x3000, scoped, tag = 'scratch operand']
  %s0 = inlined_call_operand.hbm [shape: f32[2,16,128], index: 0, kind: input, shape index: {}]
  %s1 = inlined_call_operand.hbm [shape: f32[512,256], index: 1, kind: input, shape index: {}]
  %s2 = inlined_call_operand.vmem [shape: f32[1,256], index: 2, kind: input, shape index: {}]
  %s3 = inlined_call_operand.hbm [shape: f32[512,128], index: 3, kind: input, shape index: {}]
  %s4 = inlined_call_operand.vmem [shape: f32[1,128], index: 4, kind: input, shape index: {}]
  %s5 = inlined_call_operand.hbm [shape: f32[2,16,128], index: 5, kind: output, shape index: {}]
  %s6 = sld [smem:[#allocation0]]
  $region73: #{tpu_custom_call.1} parent=0
    _
  %s8 = ssub.s32 1, %s6
  %s9 = scalar_select 0, %s8, %s6
  $region1: #{tpu_custom_call.1} parent=0
    #allocation4 [shape = 'u8[16384]{0}', space=vmem, size = 0x4000, scoped, tag = 'input window, operand 0']
    #allocation5 [shape = 's32[2]{0}', space=sflag, size = 0x8, scoped, tag = 'scoped memory for tpu_custom_call.1']
    #allocation6 [shape = 's32[2]{0}', space=sflag, size = 0x8, scoped, tag = 'scoped memory for tpu_custom_call.1']
    #allocation7 [shape = 'u8[524288]{0}', space=vmem, size = 0x80000, scoped, tag = 'input window, operand 1, single buffered']
    #allocation8 [shape = 's32[1]{0}', space=sflag, size = 0x4, scoped, tag = 'scoped memory for tpu_custom_call.1']
    #allocation9 [shape = 'u8[262144]{0}', space=vmem, size = 0x40000, scoped, tag = 'input window, operand 3, single buffered']
    #allocation10 [shape = 'u8[16384]{0}', space=vmem, size = 0x4000, scoped, tag = 'output window, operand 0']
    %10 = vsyncpa [#allocation5], 0
    %s11 = scalar_lea.sflag [#allocation5], 1
    %12 = vsyncpa %s11, 0
    %13 = vsyncpa [#allocation8], 0
    %14 = vsyncpa [#allocation6], 0
    %s15 = scalar_lea.sflag [#allocation6], 1
    %16 = vsyncpa %s15, 0
    loop: start=0, step=1, limit=4
    $region2: #{tpu_custom_call.1} parent=1 // loop_pre_header
      _
    $region3: #{tpu_custom_call.1} parent=1 // loop_header
      %s18 = sphi 0, %s22
      %p19 = scmp.ge.s32.totalorder %s18, 4
      %s25 = sphi 0, %s37
      %s26 = sphi 0, %s33
      %s27 = sphi 0, %s25
      %s28 = sphi 0, %s26
      %s29 = sphi 0, %s27
      %s30 = sphi 0, %s28
      %s42 = sphi 0, %s44
      %s45 = sphi 0, %s42
      %s46 = sphi 0, %s45
      %s62 = sphi 0, %s46
      %s66 = sphi 0, %s66
      %s68 = sphi 0, %s66
      %s69 = sphi 0, %s68
      %s83 = sphi 0, %s69
      %s87 = sphi 0, %s87
      %s89 = sphi 0, %s87
      %s90 = sphi 0, %s89
      %s104 = sphi 0, %s90
      %s108 = sphi 0, %s108
      %s110 = sphi 0, %s108
      %s111 = sphi 0, %s110
      %s125 = sphi 0, %s111
      %s129 = sphi 0, %s129
      %s131 = sphi 0, %s129
      %s132 = sphi 0, %s131
      %s146 = sphi 0, %s132
      %s154 = sphi 0, %s156
      %s157 = sphi 0, %s154
      %s158 = sphi 0, %s157
      %s174 = sphi 0, %s158
    $region4: #{tpu_custom_call.1} parent=1 // loop_header_branch
      %21 = sbr.rel (%p19) target = $region8
    $region5: #{tpu_custom_call.1} parent=1 // loop_body
      %s23 = ssub.s32 %s18, 1
      %s24 = ssub.s32 %s18, 2
      %s31 = sadd.s32 1, %s26
      %p32 = scmp.ge.s32.totalorder %s31, 1
      %s33 = scalar_select %p32, 0, %s31
      %s34 = sadd.s32 1, %s25
      %s35 = scalar_select %p32, %s34, %s25
      %p36 = scmp.ge.s32.totalorder %s35, 2
      %s37 = scalar_select %p36, 0, %s35
      %s38 = ssub.s32 %s25, %s37
      %s39 = ssub.s32 %s26, %s33
      %s40 = sor.u32 %s38, %s39
      %p41 = scmp.eq.s32.totalorder %s40, 0
      %s43 = sadd.s32 %s42, 1
      %s44 = scalar_select %p41, %s42, %s43
      %p47 = pneg %p41
      %p48 = scmp.eq.s32.totalorder %s18, 1
      %p49 = por %p47, %p48
      %p50 = scmp.ne.s32.totalorder %s42, %s45
      %p51 = scmp.eq.s32.totalorder %s18, 0
      %p52 = por %p50, %p51
      %p53 = scmp.ne.s32.totalorder %s42, %s45
      %p54 = scmp.eq.s32.totalorder %s23, 1
      %p55 = por %p53, %p54
      %p56 = scmp.ne.s32.totalorder %s45, %s46
      %p57 = scmp.eq.s32.totalorder %s23, 0
      %p58 = por %p56, %p57
      %p59 = scmp.ne.s32.totalorder %s45, %s46
      %p60 = scmp.eq.s32.totalorder %s24, 1
      %p61 = por %p59, %p60
      %p63 = scmp.ne.s32.totalorder %s46, %s62
      %p64 = scmp.eq.s32.totalorder %s24, 0
      %p65 = por %p63, %p64
      %s67 = sadd.s32 %s66, 1
      %p70 = scmp.eq.s32.totalorder %s18, 1
      %p71 = scmp.ne.s32.totalorder %s66, %s68
      %p72 = scmp.eq.s32.totalorder %s18, 0
      %p73 = por %p71, %p72
      %p74 = scmp.ne.s32.totalorder %s66, %s68
      %p75 = scmp.eq.s32.totalorder %s23, 1
      %p76 = por %p74, %p75
      %p77 = scmp.ne.s32.totalorder %s68, %s69
      %p78 = scmp.eq.s32.totalorder %s23, 0
      %p79 = por %p77, %p78
      %p80 = scmp.ne.s32.totalorder %s68, %s69
      %p81 = scmp.eq.s32.totalorder %s24, 1
      %p82 = por %p80, %p81
      %p84 = scmp.ne.s32.totalorder %s69, %s83
      %p85 = scmp.eq.s32.totalorder %s24, 0
      %p86 = por %p84, %p85
      %s88 = sadd.s32 %s87, 1
      %p91 = scmp.eq.s32.totalorder %s18, 1
      %p92 = scmp.ne.s32.totalorder %s87, %s89
      %p93 = scmp.eq.s32.totalorder %s18, 0
      %p94 = por %p92, %p93
      %p95 = scmp.ne.s32.totalorder %s87, %s89
      %p96 = scmp.eq.s32.totalorder %s23, 1
      %p97 = por %p95, %p96
      %p98 = scmp.ne.s32.totalorder %s89, %s90
      %p99 = scmp.eq.s32.totalorder %s23, 0
      %p100 = por %p98, %p99
      %p101 = scmp.ne.s32.totalorder %s89, %s90
      %p102 = scmp.eq.s32.totalorder %s24, 1
      %p103 = por %p101, %p102
      %p105 = scmp.ne.s32.totalorder %s90, %s104
      %p106 = scmp.eq.s32.totalorder %s24, 0
      %p107 = por %p105, %p106
      %s109 = sadd.s32 %s108, 1
      %p112 = scmp.eq.s32.totalorder %s18, 1
      %p113 = scmp.ne.s32.totalorder %s108, %s110
      %p114 = scmp.eq.s32.totalorder %s18, 0
      %p115 = por %p113, %p114
      %p116 = scmp.ne.s32.totalorder %s108, %s110
      %p117 = scmp.eq.s32.totalorder %s23, 1
      %p118 = por %p116, %p117
      %p119 = scmp.ne.s32.totalorder %s110, %s111
      %p120 = scmp.eq.s32.totalorder %s23, 0
      %p121 = por %p119, %p120
      %p122 = scmp.ne.s32.totalorder %s110, %s111
      %p123 = scmp.eq.s32.totalorder %s24, 1
      %p124 = por %p122, %p123
      %p126 = scmp.ne.s32.totalorder %s111, %s125
      %p127 = scmp.eq.s32.totalorder %s24, 0
      %p128 = por %p126, %p127
      %s130 = sadd.s32 %s129, 1
      %p133 = scmp.eq.s32.totalorder %s18, 1
      %p134 = scmp.ne.s32.totalorder %s129, %s131
      %p135 = scmp.eq.s32.totalorder %s18, 0
      %p136 = por %p134, %p135
      %p137 = scmp.ne.s32.totalorder %s129, %s131
      %p138 = scmp.eq.s32.totalorder %s23, 1
      %p139 = por %p137, %p138
      %p140 = scmp.ne.s32.totalorder %s131, %s132
      %p141 = scmp.eq.s32.totalorder %s23, 0
      %p142 = por %p140, %p141
      %p143 = scmp.ne.s32.totalorder %s131, %s132
      %p144 = scmp.eq.s32.totalorder %s24, 1
      %p145 = por %p143, %p144
      %p147 = scmp.ne.s32.totalorder %s132, %s146
      %p148 = scmp.eq.s32.totalorder %s24, 0
      %p149 = por %p147, %p148
      %s150 = ssub.s32 %s25, %s37
      %s151 = ssub.s32 %s26, %s33
      %s152 = sor.u32 %s150, %s151
      %p153 = scmp.eq.s32.totalorder %s152, 0
      %s155 = sadd.s32 %s154, 1
      %s156 = scalar_select %p153, %s154, %s155
      %p159 = pneg %p153
      %p160 = scmp.eq.s32.totalorder %s18, 1
      %p161 = por %p159, %p160
      %p162 = scmp.ne.s32.totalorder %s154, %s157
      %p163 = scmp.eq.s32.totalorder %s18, 0
      %p164 = por %p162, %p163
      %p165 = scmp.ne.s32.totalorder %s154, %s157
      %p166 = scmp.eq.s32.totalorder %s23, 1
      %p167 = por %p165, %p166
      %p168 = scmp.ne.s32.totalorder %s157, %s158
      %p169 = scmp.eq.s32.totalorder %s23, 0
      %p170 = por %p168, %p169
      %p171 = scmp.ne.s32.totalorder %s157, %s158
      %p172 = scmp.eq.s32.totalorder %s24, 1
      %p173 = por %p171, %p172
      %p175 = scmp.ne.s32.totalorder %s158, %s174
      %p176 = scmp.eq.s32.totalorder %s24, 0
      %p177 = por %p175, %p176
      %p178 = scmp.le.s32.totalorder 1, %s18
      %p179 = scmp.lt.s32.totalorder %s18, 3
      %p180 = pnand %p178, %p179
      %p181 = pneg %p180
      // Predicated region
      $region9: #{tpu_custom_call.1} parent=5 // pred_check
        _
      $region10: #{tpu_custom_call.1} parent=5 // pred_check_branch
        %183 = sbr.rel (%p180) target = $region12
      $region11: #{tpu_custom_call.1} parent=5 // pred_region
        %s184 = ssub.s32 %s18, 1
        // Predicated region
        $region13: #{tpu_custom_call.1} parent=11 // pred_check
          %p185 = pneg %p79
        $region14: #{tpu_custom_call.1} parent=11 // pred_check_branch
          %187 = sbr.rel (%p185) target = $region16
        $region15: #{tpu_custom_call.1} parent=11 // pred_region
          %s189 = ssub.s32 16384, 16384
          %190 = vsyncadd [#allocation8], %s189
          %s191 = sshll.u32 [#allocation7], 4
          %s192 = int_to_ptr.vmem [resolvable:$true] %s191
          %197 = dma.hbm_to_vmem [thread:$0]  %s1, 16384, %s192, [#allocation8], 256, 256, 16
        $region16: #{tpu_custom_call.1} parent=11 // pred_fallthru
          _
        // Predicated region
        $region17: #{tpu_custom_call.1} parent=11 // pred_check
          %p198 = pneg %p100
        $region18: #{tpu_custom_call.1} parent=11 // pred_check_branch
          %200 = sbr.rel (%p198) target = $region20
        $region19: #{tpu_custom_call.1} parent=11 // pred_region
          _
        $region20: #{tpu_custom_call.1} parent=11 // pred_fallthru
          _
        // Predicated region
        $region21: #{tpu_custom_call.1} parent=11 // pred_check
          %p201 = pneg %p121
        $region22: #{tpu_custom_call.1} parent=11 // pred_check_branch
          %203 = sbr.rel (%p201) target = $region24
        $region23: #{tpu_custom_call.1} parent=11 // pred_region
          %s205 = ssub.s32 8192, 8192
          %206 = vsyncadd [#allocation8], %s205
          %s207 = sshll.u32 [#allocation9], 4
          %s208 = int_to_ptr.vmem [resolvable:$true] %s207
          %213 = dma.hbm_to_vmem [thread:$0]  %s3, 8192, %s208, [#allocation8], 128, 128, 8
        $region24: #{tpu_custom_call.1} parent=11 // pred_fallthru
          _
        // Predicated region
        $region25: #{tpu_custom_call.1} parent=11 // pred_check
          %p214 = pneg %p142
        $region26: #{tpu_custom_call.1} parent=11 // pred_check_branch
          %216 = sbr.rel (%p214) target = $region28
        $region27: #{tpu_custom_call.1} parent=11 // pred_region
          _
        $region28: #{tpu_custom_call.1} parent=11 // pred_fallthru
          _
      $region12: #{tpu_custom_call.1} parent=5 // pred_fallthru
        _
      %p217 = scmp.lt.s32.totalorder %s18, 2
      // Predicated region
      $region29: #{tpu_custom_call.1} parent=5 // pred_check
        %p218 = pneg %p217
      $region30: #{tpu_custom_call.1} parent=5 // pred_check_branch
        %220 = sbr.rel (%p218) target = $region32
      $region31: #{tpu_custom_call.1} parent=5 // pred_region
        // Predicated region
        $region33: #{tpu_custom_call.1} parent=31 // pred_check
          %p221 = pneg %p52
        $region34: #{tpu_custom_call.1} parent=31 // pred_check_branch
          %223 = sbr.rel (%p221) target = $region36
        $region35: #{tpu_custom_call.1} parent=31 // pred_region
          %s224 = sand.u32 %s42, 1
          %s225 = scalar_lea.sflag [#allocation5], %s224
          %s226 = sand.u32 %s42, 1
          %s227 = smul.addr %s226, 16
          %s228 = scalar_lea.vmem [#allocation4], %s227
          %s229 = smul.u32 2, %s26
          %s231 = ssub.s32 256, 256
          %232 = vsyncadd %s225, %s231
          %s233 = smul.addr %s25, 2
          %s234 = sadd.s32 %s229, %s233
          %s235 = smul.addr %s234, 128
          %s236 = scalar_lea.hbm %s0, %s235
          %s237 = sshll.u32 %s228, 4
          %s238 = int_to_ptr.vmem [resolvable:$true] %s237
          %243 = dma.hbm_to_vmem [thread:$0]  %s236, 256, %s238, %s225, 128, 128, 8
        $region36: #{tpu_custom_call.1} parent=31 // pred_fallthru
          _
      $region32: #{tpu_custom_call.1} parent=5 // pred_fallthru
        _
      %p244 = scmp.le.s32.totalorder 1, %s18
      %p245 = scmp.lt.s32.totalorder %s18, 3
      %p246 = pnand %p244, %p245
      %p247 = pneg %p246
      // Predicated region
      $region37: #{tpu_custom_call.1} parent=5 // pred_check
        _
      $region38: #{tpu_custom_call.1} parent=5 // pred_check_branch
        %249 = sbr.rel (%p246) target = $region40
      $region39: #{tpu_custom_call.1} parent=5 // pred_region
        %s250 = ssub.s32 %s18, 1
        %s251 = sand.u32 %s45, 1
        %s252 = scalar_lea.sflag [#allocation5], %s251
        %s253 = sand.u32 %s45, 1
        %s254 = smul.addr %s253, 16
        %s255 = scalar_lea.vmem [#allocation4], %s254
        // Predicated region
        $region41: #{tpu_custom_call.1} parent=39 // pred_check
          %p256 = pneg %p58
        $region42: #{tpu_custom_call.1} parent=39 // pred_check_branch
          %258 = sbr.rel (%p256) target = $region44
        $region43: #{tpu_custom_call.1} parent=39 // pred_region
          %259 = dma.done %s252, 256
        $region44: #{tpu_custom_call.1} parent=39 // pred_fallthru
          _
        // Predicated region
        $region45: #{tpu_custom_call.1} parent=39 // pred_check
          %p260 = pneg %p79
        $region46: #{tpu_custom_call.1} parent=39 // pred_check_branch
          %262 = sbr.rel (%p260) target = $region48
        $region47: #{tpu_custom_call.1} parent=39 // pred_region
          %263 = dma.done [#allocation8], 16384
        $region48: #{tpu_custom_call.1} parent=39 // pred_fallthru
          _
        // Predicated region
        $region49: #{tpu_custom_call.1} parent=39 // pred_check
          %p264 = pneg %p121
        $region50: #{tpu_custom_call.1} parent=39 // pred_check_branch
          %266 = sbr.rel (%p264) target = $region52
        $region51: #{tpu_custom_call.1} parent=39 // pred_region
          %267 = dma.done [#allocation8], 8192
        $region52: #{tpu_custom_call.1} parent=39 // pred_fallthru
          _
        %s268 = sand.u32 %s45, 1
        %s269 = scalar_lea.sflag [#allocation5], %s268
        %s270 = sand.u32 %s45, 1
        %s271 = smul.addr %s270, 16
        %s272 = scalar_lea.vmem [#allocation4], %s271
        %p273 = pneg %p58
        %p274 = pneg %p55
        %p275 = pneg %p79
        %p276 = pneg %p76
        %p277 = pneg %p100
        %p278 = pneg %p97
        %p279 = pneg %p121
        %p280 = pneg %p118
        %p281 = pneg %p142
        %p282 = pneg %p139
        %p283 = pneg %p170
        %p284 = pneg %p167
        %s285 = sand.u32 %s157, 1
        %s286 = scalar_lea.sflag [#allocation6], %s285
        %s287 = sand.u32 %s157, 1
        %s288 = smul.addr %s287, 16
        %s289 = scalar_lea.vmem [#allocation10], %s288
        %s290 = smul.u32 2, %s28
        %s291 = smul.u32 2, %s28
        %p292 = scmp.eq.s32.totalorder %s28, 0
        // Predicated region
        $region53: #{tpu_custom_call.1} parent=39 // pred_check
          %p293 = pneg %p292
        $region54: #{tpu_custom_call.1} parent=39 // pred_check_branch
          %295 = sbr.rel (%p293) target = $region56
        $region55: #{tpu_custom_call.1} parent=39 // pred_region
          %296 = vst [vmem:[#allocation2] sm:$0x3f] 0.0
          %297 = vst [vmem:[#allocation3] sm:$0x3f] 0.0
        $region56: #{tpu_custom_call.1} parent=39 // pred_fallthru
          _
        %v298 = vld [vmem:[%s255] sm:$0xff]
        %v299 = vld [vmem:[%s255 + $0x8] sm:$0xff]
        %300 = vst [vmem:[#allocation2 + $0x6] sm:$0xff] %v298
        %301 = vst [vmem:[#allocation2 + $0xe] sm:$0xff] %v299
        %v302 = vld [vmem:[#allocation2] sm:$0xff]
        %v303 = vld [vmem:[#allocation2 + $0x8] sm:$0xff]
        %v304 = vld [vmem:[#allocation2 + $0x2] sm:$0xff]
        %v305 = vld [vmem:[#allocation2 + $0xa] sm:$0xff]
        %v306 = vld [vmem:[#allocation2 + $0x4] sm:$0xff]
        %v307 = vld [vmem:[#allocation2 + $0xc] sm:$0xff]
        %v308 = vld [vmem:[#allocation7] sm:$0xff]
        %v309 = vld [vmem:[#allocation7 + $0x8] sm:$0xff]
        %v310 = vld [vmem:[#allocation7 + $0x10] sm:$0xff]
        %v311 = vld [vmem:[#allocation7 + $0x18] sm:$0xff]
        %v312 = vld [vmem:[#allocation7 + $0x20] sm:$0xff]
        %v313 = vld [vmem:[#allocation7 + $0x28] sm:$0xff]
        %v314 = vld [vmem:[#allocation7 + $0x30] sm:$0xff]
        %v315 = vld [vmem:[#allocation7 + $0x38] sm:$0xff]
        %v316 = vld [vmem:[#allocation7 + $0x40] sm:$0xff]
        %v317 = vld [vmem:[#allocation7 + $0x48] sm:$0xff]
        %v318 = vld [vmem:[#allocation7 + $0x50] sm:$0xff]
        %v319 = vld [vmem:[#allocation7 + $0x58] sm:$0xff]
        %v320 = vld [vmem:[#allocation7 + $0x60] sm:$0xff]
        %v321 = vld [vmem:[#allocation7 + $0x68] sm:$0xff]
        %v322 = vld [vmem:[#allocation7 + $0x70] sm:$0xff]
        %v323 = vld [vmem:[#allocation7 + $0x78] sm:$0xff]
        %v324 = vld [vmem:[#allocation7 + $0x80] sm:$0xff]
        %v325 = vld [vmem:[#allocation7 + $0x88] sm:$0xff]
        %v326 = vld [vmem:[#allocation7 + $0x90] sm:$0xff]
        %v327 = vld [vmem:[#allocation7 + $0x98] sm:$0xff]
        %v328 = vld [vmem:[#allocation7 + $0xa0] sm:$0xff]
        %v329 = vld [vmem:[#allocation7 + $0xa8] sm:$0xff]
        %v330 = vld [vmem:[#allocation7 + $0xb0] sm:$0xff]
        %v331 = vld [vmem:[#allocation7 + $0xb8] sm:$0xff]
        %v332 = vld [vmem:[#allocation7 + $0xc0] sm:$0xff]
        %v333 = vld [vmem:[#allocation7 + $0xc8] sm:$0xff]
        %v334 = vld [vmem:[#allocation7 + $0xd0] sm:$0xff]
        %v335 = vld [vmem:[#allocation7 + $0xd8] sm:$0xff]
        %v336 = vld [vmem:[#allocation7 + $0xe0] sm:$0xff]
        %v337 = vld [vmem:[#allocation7 + $0xe8] sm:$0xff]
        %v338 = vld [vmem:[#allocation7 + $0xf0] sm:$0xff]
        %v339 = vld [vmem:[#allocation7 + $0xf8] sm:$0xff]
        %v340 = vld [vmem:[#allocation7 + $0x100] sm:$0xff]
        %v341 = vld [vmem:[#allocation7 + $0x108] sm:$0xff]
        %v342 = vld [vmem:[#allocation7 + $0x110] sm:$0xff]
        %v343 = vld [vmem:[#allocation7 + $0x118] sm:$0xff]
        %v344 = vld [vmem:[#allocation7 + $0x120] sm:$0xff]
        %v345 = vld [vmem:[#allocation7 + $0x128] sm:$0xff]
        %v346 = vld [vmem:[#allocation7 + $0x130] sm:$0xff]
        %v347 = vld [vmem:[#allocation7 + $0x138] sm:$0xff]
        %v348 = vld [vmem:[#allocation7 + $0x140] sm:$0xff]
        %v349 = vld [vmem:[#allocation7 + $0x148] sm:$0xff]
        %v350 = vld [vmem:[#allocation7 + $0x150] sm:$0xff]
        %v351 = vld [vmem:[#allocation7 + $0x158] sm:$0xff]
        %v352 = vld [vmem:[#allocation7 + $0x160] sm:$0xff]
        %v353 = vld [vmem:[#allocation7 + $0x168] sm:$0xff]
        %v354 = vld [vmem:[#allocation7 + $0x170] sm:$0xff]
        %v355 = vld [vmem:[#allocation7 + $0x178] sm:$0xff]
        %v356 = vld [vmem:[#allocation7 + $0x180] sm:$0xff]
        %v357 = vld [vmem:[#allocation7 + $0x188] sm:$0xff]
        %v358 = vld [vmem:[#allocation7 + $0x190] sm:$0xff]
        %v359 = vld [vmem:[#allocation7 + $0x198] sm:$0xff]
        %v360 = vld [vmem:[#allocation7 + $0x1a0] sm:$0xff]
        %v361 = vld [vmem:[#allocation7 + $0x1a8] sm:$0xff]
        %v362 = vld [vmem:[#allocation7 + $0x1b0] sm:$0xff]
        %v363 = vld [vmem:[#allocation7 + $0x1b8] sm:$0xff]
        %v364 = vld [vmem:[#allocation7 + $0x1c0] sm:$0xff]
        %v365 = vld [vmem:[#allocation7 + $0x1c8] sm:$0xff]
        %v366 = vld [vmem:[#allocation7 + $0x1d0] sm:$0xff]
        %v367 = vld [vmem:[#allocation7 + $0x1d8] sm:$0xff]
        %v368 = vld [vmem:[#allocation7 + $0x1e0] sm:$0xff]
        %v369 = vld [vmem:[#allocation7 + $0x1e8] sm:$0xff]
        %v370 = vld [vmem:[#allocation7 + $0x1f0] sm:$0xff]
        %v371 = vld [vmem:[#allocation7 + $0x1f8] sm:$0xff]
        %v372 = vld [vmem:[#allocation7 + $0x200] sm:$0xff]
        %v373 = vld [vmem:[#allocation7 + $0x208] sm:$0xff]
        %v374 = vld [vmem:[#allocation7 + $0x210] sm:$0xff]
        %v375 = vld [vmem:[#allocation7 + $0x218] sm:$0xff]
        %v376 = vld [vmem:[#allocation7 + $0x220] sm:$0xff]
        %v377 = vld [vmem:[#allocation7 + $0x228] sm:$0xff]
        %v378 = vld [vmem:[#allocation7 + $0x230] sm:$0xff]
        %v379 = vld [vmem:[#allocation7 + $0x238] sm:$0xff]
        %v380 = vld [vmem:[#allocation7 + $0x240] sm:$0xff]
        %v381 = vld [vmem:[#allocation7 + $0x248] sm:$0xff]
        %v382 = vld [vmem:[#allocation7 + $0x250] sm:$0xff]
        %v383 = vld [vmem:[#allocation7 + $0x258] sm:$0xff]
        %v384 = vld [vmem:[#allocation7 + $0x260] sm:$0xff]
        %v385 = vld [vmem:[#allocation7 + $0x268] sm:$0xff]
        %v386 = vld [vmem:[#allocation7 + $0x270] sm:$0xff]
        %v387 = vld [vmem:[#allocation7 + $0x278] sm:$0xff]
        %v388 = vld [vmem:[#allocation7 + $0x280] sm:$0xff]
        %v389 = vld [vmem:[#allocation7 + $0x288] sm:$0xff]
        %v390 = vld [vmem:[#allocation7 + $0x290] sm:$0xff]
        %v391 = vld [vmem:[#allocation7 + $0x298] sm:$0xff]
        %v392 = vld [vmem:[#allocation7 + $0x2a0] sm:$0xff]
        %v393 = vld [vmem:[#allocation7 + $0x2a8] sm:$0xff]
        %v394 = vld [vmem:[#allocation7 + $0x2b0] sm:$0xff]
        %v395 = vld [vmem:[#allocation7 + $0x2b8] sm:$0xff]
        %v396 = vld [vmem:[#allocation7 + $0x2c0] sm:$0xff]
        %v397 = vld [vmem:[#allocation7 + $0x2c8] sm:$0xff]
        %v398 = vld [vmem:[#allocation7 + $0x2d0] sm:$0xff]
        %v399 = vld [vmem:[#allocation7 + $0x2d8] sm:$0xff]
        %v400 = vld [vmem:[#allocation7 + $0x2e0] sm:$0xff]
        %v401 = vld [vmem:[#allocation7 + $0x2e8] sm:$0xff]
        %v402 = vld [vmem:[#allocation7 + $0x2f0] sm:$0xff]
        %v403 = vld [vmem:[#allocation7 + $0x2f8] sm:$0xff]
        %v404 = vld [vmem:[#allocation7 + $0x300] sm:$0xff]
        %v405 = vld [vmem:[#allocation7 + $0x308] sm:$0xff]
        %v406 = vld [vmem:[#allocation7 + $0x310] sm:$0xff]
        %v407 = vld [vmem:[#allocation7 + $0x318] sm:$0xff]
        %v408 = vld [vmem:[#allocation7 + $0x320] sm:$0xff]
        %v409 = vld [vmem:[#allocation7 + $0x328] sm:$0xff]
        %v410 = vld [vmem:[#allocation7 + $0x330] sm:$0xff]
        %v411 = vld [vmem:[#allocation7 + $0x338] sm:$0xff]
        %v412 = vld [vmem:[#allocation7 + $0x340] sm:$0xff]
        %v413 = vld [vmem:[#allocation7 + $0x348] sm:$0xff]
        %v414 = vld [vmem:[#allocation7 + $0x350] sm:$0xff]
        %v415 = vld [vmem:[#allocation7 + $0x358] sm:$0xff]
        %v416 = vld [vmem:[#allocation7 + $0x360] sm:$0xff]
        %v417 = vld [vmem:[#allocation7 + $0x368] sm:$0xff]
        %v418 = vld [vmem:[#allocation7 + $0x370] sm:$0xff]
        %v419 = vld [vmem:[#allocation7 + $0x378] sm:$0xff]
        %v420 = vld [vmem:[#allocation7 + $0x380] sm:$0xff]
        %v421 = vld [vmem:[#allocation7 + $0x388] sm:$0xff]
        %v422 = vld [vmem:[#allocation7 + $0x390] sm:$0xff]
        %v423 = vld [vmem:[#allocation7 + $0x398] sm:$0xff]
        %v424 = vld [vmem:[#allocation7 + $0x3a0] sm:$0xff]
        %v425 = vld [vmem:[#allocation7 + $0x3a8] sm:$0xff]
        %v426 = vld [vmem:[#allocation7 + $0x3b0] sm:$0xff]
        %v427 = vld [vmem:[#allocation7 + $0x3b8] sm:$0xff]
        %v428 = vld [vmem:[#allocation7 + $0x3c0] sm:$0xff]
        %v429 = vld [vmem:[#allocation7 + $0x3c8] sm:$0xff]
        %v430 = vld [vmem:[#allocation7 + $0x3d0] sm:$0xff]
        %v431 = vld [vmem:[#allocation7 + $0x3d8] sm:$0xff]
        %v432 = vld [vmem:[#allocation7 + $0x3e0] sm:$0xff]
        %v433 = vld [vmem:[#allocation7 + $0x3e8] sm:$0xff]
        %v434 = vld [vmem:[#allocation7 + $0x3f0] sm:$0xff]
        %v435 = vld [vmem:[#allocation7 + $0x3f8] sm:$0xff]
        %v436 = vld [vmem:[%s2] sm:$0x3]
        %v438 = vlaneseq
        %v439 = vshrl.u32 %v438, 7
        %v440 = vsub.s32 0, %v439
        %v441 = vrot.slane %v436, %v440
        %v442 = vlaneseq
        %v443 = vshrl.u32 %v442, 7
        %v444 = vsub.s32 1, %v443
        %v445 = vrot.slane %v436, %v444
        %448 = vmatprep.subr.mxu0 %v339
        %449 = vmatpush1.msra.mxu0 %v338
        %450 = vmatprep.subr.mxu0 %v337
        %451 = vmatpush1.msra.mxu0 %v336
        %452 = vmatprep.subr.mxu0 %v335
        %453 = vmatpush1.msra.mxu0 %v334
        %454 = vmatprep.subr.mxu0 %v333
        %455 = vmatpush1.msra.mxu0 %v332
        %456 = vmatprep.subr.mxu0 %v331
        %457 = vmatpush1.msra.mxu0 %v330
        %458 = vmatprep.subr.mxu0 %v329
        %459 = vmatpush1.msra.mxu0 %v328
        %460 = vmatprep.subr.mxu0 %v327
        %461 = vmatpush1.msra.mxu0 %v326
        %462 = vmatprep.subr.mxu0 %v325
        %463 = vmatpush1.msra.mxu0 %v324
        %464 = vmatprep.subr.mxu0 %v323
        %465 = vmatpush1.msra.mxu0 %v322
        %466 = vmatprep.subr.mxu0 %v321
        %467 = vmatpush1.msra.mxu0 %v320
        %468 = vmatprep.subr.mxu0 %v319
        %469 = vmatpush1.msra.mxu0 %v318
        %470 = vmatprep.subr.mxu0 %v317
        %471 = vmatpush1.msra.mxu0 %v316
        %472 = vmatprep.subr.mxu0 %v315
        %473 = vmatpush1.msra.mxu0 %v314
        %474 = vmatprep.subr.mxu0 %v313
        %475 = vmatpush1.msra.mxu0 %v312
        %476 = vmatprep.subr.mxu0 %v311
        %477 = vmatpush1.msra.mxu0 %v310
        %478 = vmatprep.subr.mxu0 %v309
        %479 = vmatpush1.msra.mxu0 %v308
        %480 = vmatprep.subr.mxu0 %v371
        %481 = vmatpush2.msra.mxu0 %v370
        %482 = vmatprep.subr.mxu0 %v369
        %483 = vmatpush2.msra.mxu0 %v368
        %484 = vmatprep.subr.mxu0 %v367
        %485 = vmatpush2.msra.mxu0 %v366
        %486 = vmatprep.subr.mxu0 %v365
        %487 = vmatpush2.msra.mxu0 %v364
        %488 = vmatprep.subr.mxu0 %v363
        %489 = vmatpush2.msra.mxu0 %v362
        %490 = vmatprep.subr.mxu0 %v361
        %491 = vmatpush2.msra.mxu0 %v360
        %492 = vmatprep.subr.mxu0 %v359
        %493 = vmatpush2.msra.mxu0 %v358
        %494 = vmatprep.subr.mxu0 %v357
        %495 = vmatpush2.msra.mxu0 %v356
        %496 = vmatprep.subr.mxu0 %v355
        %497 = vmatpush2.msra.mxu0 %v354
        %498 = vmatprep.subr.mxu0 %v353
        %499 = vmatpush2.msra.mxu0 %v352
        %500 = vmatprep.subr.mxu0 %v351
        %501 = vmatpush2.msra.mxu0 %v350
        %502 = vmatprep.subr.mxu0 %v349
        %503 = vmatpush2.msra.mxu0 %v348
        %504 = vmatprep.subr.mxu0 %v347
        %505 = vmatpush2.msra.mxu0 %v346
        %506 = vmatprep.subr.mxu0 %v345
        %507 = vmatpush2.msra.mxu0 %v344
        %508 = vmatprep.subr.mxu0 %v343
        %509 = vmatpush2.msra.mxu0 %v342
        %510 = vmatprep.subr.mxu0 %v341
        %511 = vmatpush2.msra.mxu0 %v340
        %512 = vmatprep.mubr.f32.mxu0 %v304
        %513 = vmatmul.mubr.f32.gmra.mxu0 %v302
        %v514 = vpop.f32.mrf.mxu0
        %v515 = vadd.f32 %v441, %v514
        %v516 = vpop.f32.mrf.mxu0
        %v517 = vadd.f32 %v445, %v516
        %518 = vmatprep.mubr.f32.mxu0 %v305
        %519 = vmatmul.mubr.f32.gmra.mxu0 %v303
        %v520 = vpop.f32.mrf.mxu0
        %v521 = vadd.f32 %v441, %v520
        %v522 = vpop.f32.mrf.mxu0
        %v523 = vadd.f32 %v445, %v522
        %524 = vdwg.mxu0
        %525 = vmatprep.subr.mxu0 %v403
        %526 = vmatpush1.msra.mxu0 %v402
        %527 = vmatprep.subr.mxu0 %v401
        %528 = vmatpush1.msra.mxu0 %v400
        %529 = vmatprep.subr.mxu0 %v399
        %530 = vmatpush1.msra.mxu0 %v398
        %531 = vmatprep.subr.mxu0 %v397
        %532 = vmatpush1.msra.mxu0 %v396
        %533 = vmatprep.subr.mxu0 %v395
        %534 = vmatpush1.msra.mxu0 %v394
        %535 = vmatprep.subr.mxu0 %v393
        %536 = vmatpush1.msra.mxu0 %v392
        %537 = vmatprep.subr.mxu0 %v391
        %538 = vmatpush1.msra.mxu0 %v390
        %539 = vmatprep.subr.mxu0 %v389
        %540 = vmatpush1.msra.mxu0 %v388
        %541 = vmatprep.subr.mxu0 %v387
        %542 = vmatpush1.msra.mxu0 %v386
        %543 = vmatprep.subr.mxu0 %v385
        %544 = vmatpush1.msra.mxu0 %v384
        %545 = vmatprep.subr.mxu0 %v383
        %546 = vmatpush1.msra.mxu0 %v382
        %547 = vmatprep.subr.mxu0 %v381
        %548 = vmatpush1.msra.mxu0 %v380
        %549 = vmatprep.subr.mxu0 %v379
        %550 = vmatpush1.msra.mxu0 %v378
        %551 = vmatprep.subr.mxu0 %v377
        %552 = vmatpush1.msra.mxu0 %v376
        %553 = vmatprep.subr.mxu0 %v375
        %554 = vmatpush1.msra.mxu0 %v374
        %555 = vmatprep.subr.mxu0 %v373
        %556 = vmatpush1.msra.mxu0 %v372
        %557 = vmatprep.subr.mxu0 %v435
        %558 = vmatpush2.msra.mxu0 %v434
        %559 = vmatprep.subr.mxu0 %v433
        %560 = vmatpush2.msra.mxu0 %v432
        %561 = vmatprep.subr.mxu0 %v431
        %562 = vmatpush2.msra.mxu0 %v430
        %563 = vmatprep.subr.mxu0 %v429
        %564 = vmatpush2.msra.mxu0 %v428
        %565 = vmatprep.subr.mxu0 %v427
        %566 = vmatpush2.msra.mxu0 %v426
        %567 = vmatprep.subr.mxu0 %v425
        %568 = vmatpush2.msra.mxu0 %v424
        %569 = vmatprep.subr.mxu0 %v423
        %570 = vmatpush2.msra.mxu0 %v422
        %571 = vmatprep.subr.mxu0 %v421
        %572 = vmatpush2.msra.mxu0 %v420
        %573 = vmatprep.subr.mxu0 %v419
        %574 = vmatpush2.msra.mxu0 %v418
        %575 = vmatprep.subr.mxu0 %v417
        %576 = vmatpush2.msra.mxu0 %v416
        %577 = vmatprep.subr.mxu0 %v415
        %578 = vmatpush2.msra.mxu0 %v414
        %579 = vmatprep.subr.mxu0 %v413
        %580 = vmatpush2.msra.mxu0 %v412
        %581 = vmatprep.subr.mxu0 %v411
        %582 = vmatpush2.msra.mxu0 %v410
        %583 = vmatprep.subr.mxu0 %v409
        %584 = vmatpush2.msra.mxu0 %v408
        %585 = vmatprep.subr.mxu0 %v407
        %586 = vmatpush2.msra.mxu0 %v406
        %587 = vmatprep.subr.mxu0 %v405
        %588 = vmatpush2.msra.mxu0 %v404
        %589 = vmatprep.mubr.f32.mxu0 %v298
        %590 = vmatmul.mubr.f32.gmra.mxu0 %v306
        %v591 = vpop.f32.mrf.mxu0
        %v592 = vadd.f32 %v515, %v591
        %v593 = vpop.f32.mrf.mxu0
        %v594 = vadd.f32 %v517, %v593
        %595 = vmatprep.mubr.f32.mxu0 %v299
        %596 = vmatmul.mubr.f32.gmra.mxu0 %v307
        %v597 = vpop.f32.mrf.mxu0
        %v598 = vadd.f32 %v521, %v597
        %v599 = vpop.f32.mrf.mxu0
        %v600 = vadd.f32 %v523, %v599
        %601 = vdwg.mxu0
        %v602 = vmax.f32 %v592, 0.0
        %v603 = vmax.f32 %v598, 0.0
        %604 = vst [vmem:[#allocation3 + $0x6] sm:$0xff] %v602
        %605 = vst [vmem:[#allocation3 + $0xe] sm:$0xff] %v603
        %v606 = vld [vmem:[#allocation3] sm:$0xff]
        %v607 = vld [vmem:[#allocation3 + $0x8] sm:$0xff]
        %v608 = vld [vmem:[#allocation3 + $0x2] sm:$0xff]
        %v609 = vld [vmem:[#allocation3 + $0xa] sm:$0xff]
        %v610 = vld [vmem:[#allocation3 + $0x4] sm:$0xff]
        %v611 = vld [vmem:[#allocation3 + $0xc] sm:$0xff]
        %v612 = vld [vmem:[#allocation9] sm:$0xff]
        %v613 = vld [vmem:[#allocation9 + $0x8] sm:$0xff]
        %v614 = vld [vmem:[#allocation9 + $0x10] sm:$0xff]
        %v615 = vld [vmem:[#allocation9 + $0x18] sm:$0xff]
        %v616 = vld [vmem:[#allocation9 + $0x20] sm:$0xff]
        %v617 = vld [vmem:[#allocation9 + $0x28] sm:$0xff]
        %v618 = vld [vmem:[#allocation9 + $0x30] sm:$0xff]
        %v619 = vld [vmem:[#allocation9 + $0x38] sm:$0xff]
        %v620 = vld [vmem:[#allocation9 + $0x40] sm:$0xff]
        %v621 = vld [vmem:[#allocation9 + $0x48] sm:$0xff]
        %v622 = vld [vmem:[#allocation9 + $0x50] sm:$0xff]
        %v623 = vld [vmem:[#allocation9 + $0x58] sm:$0xff]
        %v624 = vld [vmem:[#allocation9 + $0x60] sm:$0xff]
        %v625 = vld [vmem:[#allocation9 + $0x68] sm:$0xff]
        %v626 = vld [vmem:[#allocation9 + $0x70] sm:$0xff]
        %v627 = vld [vmem:[#allocation9 + $0x78] sm:$0xff]
        %v628 = vld [vmem:[#allocation9 + $0x80] sm:$0xff]
        %v629 = vld [vmem:[#allocation9 + $0x88] sm:$0xff]
        %v630 = vld [vmem:[#allocation9 + $0x90] sm:$0xff]
        %v631 = vld [vmem:[#allocation9 + $0x98] sm:$0xff]
        %v632 = vld [vmem:[#allocation9 + $0xa0] sm:$0xff]
        %v633 = vld [vmem:[#allocation9 + $0xa8] sm:$0xff]
        %v634 = vld [vmem:[#allocation9 + $0xb0] sm:$0xff]
        %v635 = vld [vmem:[#allocation9 + $0xb8] sm:$0xff]
        %v636 = vld [vmem:[#allocation9 + $0xc0] sm:$0xff]
        %v637 = vld [vmem:[#allocation9 + $0xc8] sm:$0xff]
        %v638 = vld [vmem:[#allocation9 + $0xd0] sm:$0xff]
        %v639 = vld [vmem:[#allocation9 + $0xd8] sm:$0xff]
        %v640 = vld [vmem:[#allocation9 + $0xe0] sm:$0xff]
        %v641 = vld [vmem:[#allocation9 + $0xe8] sm:$0xff]
        %v642 = vld [vmem:[#allocation9 + $0xf0] sm:$0xff]
        %v643 = vld [vmem:[#allocation9 + $0xf8] sm:$0xff]
        %v644 = vld [vmem:[#allocation9 + $0x100] sm:$0xff]
        %v645 = vld [vmem:[#allocation9 + $0x108] sm:$0xff]
        %v646 = vld [vmem:[#allocation9 + $0x110] sm:$0xff]
        %v647 = vld [vmem:[#allocation9 + $0x118] sm:$0xff]
        %v648 = vld [vmem:[#allocation9 + $0x120] sm:$0xff]
        %v649 = vld [vmem:[#allocation9 + $0x128] sm:$0xff]
        %v650 = vld [vmem:[#allocation9 + $0x130] sm:$0xff]
        %v651 = vld [vmem:[#allocation9 + $0x138] sm:$0xff]
        %v652 = vld [vmem:[#allocation9 + $0x140] sm:$0xff]
        %v653 = vld [vmem:[#allocation9 + $0x148] sm:$0xff]
        %v654 = vld [vmem:[#allocation9 + $0x150] sm:$0xff]
        %v655 = vld [vmem:[#allocation9 + $0x158] sm:$0xff]
        %v656 = vld [vmem:[#allocation9 + $0x160] sm:$0xff]
        %v657 = vld [vmem:[#allocation9 + $0x168] sm:$0xff]
        %v658 = vld [vmem:[#allocation9 + $0x170] sm:$0xff]
        %v659 = vld [vmem:[#allocation9 + $0x178] sm:$0xff]
        %v660 = vld [vmem:[#allocation9 + $0x180] sm:$0xff]
        %v661 = vld [vmem:[#allocation9 + $0x188] sm:$0xff]
        %v662 = vld [vmem:[#allocation9 + $0x190] sm:$0xff]
        %v663 = vld [vmem:[#allocation9 + $0x198] sm:$0xff]
        %v664 = vld [vmem:[#allocation9 + $0x1a0] sm:$0xff]
        %v665 = vld [vmem:[#allocation9 + $0x1a8] sm:$0xff]
        %v666 = vld [vmem:[#allocation9 + $0x1b0] sm:$0xff]
        %v667 = vld [vmem:[#allocation9 + $0x1b8] sm:$0xff]
        %v668 = vld [vmem:[#allocation9 + $0x1c0] sm:$0xff]
        %v669 = vld [vmem:[#allocation9 + $0x1c8] sm:$0xff]
        %v670 = vld [vmem:[#allocation9 + $0x1d0] sm:$0xff]
        %v671 = vld [vmem:[#allocation9 + $0x1d8] sm:$0xff]
        %v672 = vld [vmem:[#allocation9 + $0x1e0] sm:$0xff]
        %v673 = vld [vmem:[#allocation9 + $0x1e8] sm:$0xff]
        %v674 = vld [vmem:[#allocation9 + $0x1f0] sm:$0xff]
        %v675 = vld [vmem:[#allocation9 + $0x1f8] sm:$0xff]
        %v676 = vld [vmem:[%s4] sm:$0x1]
        %v678 = vlaneseq
        %v679 = vshrl.u32 %v678, 7
        %v680 = vsub.s32 0, %v679
        %v681 = vrot.slane %v676, %v680
        %683 = vmatprep.subr.mxu0 0.0
        %684 = vmatpush1.msra.mxu0 %v627
        %685 = vmatprep.subr.mxu0 0.0
        %686 = vmatpush1.msra.mxu0 %v626
        %687 = vmatprep.subr.mxu0 0.0
        %688 = vmatpush1.msra.mxu0 %v625
        %689 = vmatprep.subr.mxu0 0.0
        %690 = vmatpush1.msra.mxu0 %v624
        %691 = vmatprep.subr.mxu0 0.0
        %692 = vmatpush1.msra.mxu0 %v623
        %693 = vmatprep.subr.mxu0 0.0
        %694 = vmatpush1.msra.mxu0 %v622
        %695 = vmatprep.subr.mxu0 0.0
        %696 = vmatpush1.msra.mxu0 %v621
        %697 = vmatprep.subr.mxu0 0.0
        %698 = vmatpush1.msra.mxu0 %v620
        %699 = vmatprep.subr.mxu0 0.0
        %700 = vmatpush1.msra.mxu0 %v619
        %701 = vmatprep.subr.mxu0 0.0
        %702 = vmatpush1.msra.mxu0 %v618
        %703 = vmatprep.subr.mxu0 0.0
        %704 = vmatpush1.msra.mxu0 %v617
        %705 = vmatprep.subr.mxu0 0.0
        %706 = vmatpush1.msra.mxu0 %v616
        %707 = vmatprep.subr.mxu0 0.0
        %708 = vmatpush1.msra.mxu0 %v615
        %709 = vmatprep.subr.mxu0 0.0
        %710 = vmatpush1.msra.mxu0 %v614
        %711 = vmatprep.subr.mxu0 0.0
        %712 = vmatpush1.msra.mxu0 %v613
        %713 = vmatprep.subr.mxu0 0.0
        %714 = vmatpush1.msra.mxu0 %v612
        %715 = vmatprep.subr.mxu0 0.0
        %716 = vmatpush2.msra.mxu0 %v643
        %717 = vmatprep.subr.mxu0 0.0
        %718 = vmatpush2.msra.mxu0 %v642
        %719 = vmatprep.subr.mxu0 0.0
        %720 = vmatpush2.msra.mxu0 %v641
        %721 = vmatprep.subr.mxu0 0.0
        %722 = vmatpush2.msra.mxu0 %v640
        %723 = vmatprep.subr.mxu0 0.0
        %724 = vmatpush2.msra.mxu0 %v639
        %725 = vmatprep.subr.mxu0 0.0
        %726 = vmatpush2.msra.mxu0 %v638
        %727 = vmatprep.subr.mxu0 0.0
        %728 = vmatpush2.msra.mxu0 %v637
        %729 = vmatprep.subr.mxu0 0.0
        %730 = vmatpush2.msra.mxu0 %v636
        %731 = vmatprep.subr.mxu0 0.0
        %732 = vmatpush2.msra.mxu0 %v635
        %733 = vmatprep.subr.mxu0 0.0
        %734 = vmatpush2.msra.mxu0 %v634
        %735 = vmatprep.subr.mxu0 0.0
        %736 = vmatpush2.msra.mxu0 %v633
        %737 = vmatprep.subr.mxu0 0.0
        %738 = vmatpush2.msra.mxu0 %v632
        %739 = vmatprep.subr.mxu0 0.0
        %740 = vmatpush2.msra.mxu0 %v631
        %741 = vmatprep.subr.mxu0 0.0
        %742 = vmatpush2.msra.mxu0 %v630
        %743 = vmatprep.subr.mxu0 0.0
        %744 = vmatpush2.msra.mxu0 %v629
        %745 = vmatprep.subr.mxu0 0.0
        %746 = vmatpush2.msra.mxu0 %v628
        %747 = vmatprep.mubr.f32.mxu0 %v608
        %748 = vmatmul.mubr.f32.gmra.mxu0 %v606
        %v749 = vpop.f32.mrf.mxu0
        %v750 = vadd.f32 %v681, %v749
        %v751 = vpop.f32.mrf.mxu0
        %752 = vmatprep.mubr.f32.mxu0 %v609
        %753 = vmatmul.mubr.f32.gmra.mxu0 %v607
        %v754 = vpop.f32.mrf.mxu0
        %v755 = vadd.f32 %v681, %v754
        %v756 = vpop.f32.mrf.mxu0
        %757 = vdwg.mxu0
        %758 = vmatprep.subr.mxu0 0.0
        %759 = vmatpush1.msra.mxu0 %v659
        %760 = vmatprep.subr.mxu0 0.0
        %761 = vmatpush1.msra.mxu0 %v658
        %762 = vmatprep.subr.mxu0 0.0
        %763 = vmatpush1.msra.mxu0 %v657
        %764 = vmatprep.subr.mxu0 0.0
        %765 = vmatpush1.msra.mxu0 %v656
        %766 = vmatprep.subr.mxu0 0.0
        %767 = vmatpush1.msra.mxu0 %v655
        %768 = vmatprep.subr.mxu0 0.0
        %769 = vmatpush1.msra.mxu0 %v654
        %770 = vmatprep.subr.mxu0 0.0
        %771 = vmatpush1.msra.mxu0 %v653
        %772 = vmatprep.subr.mxu0 0.0
        %773 = vmatpush1.msra.mxu0 %v652
        %774 = vmatprep.subr.mxu0 0.0
        %775 = vmatpush1.msra.mxu0 %v651
        %776 = vmatprep.subr.mxu0 0.0
        %777 = vmatpush1.msra.mxu0 %v650
        %778 = vmatprep.subr.mxu0 0.0
        %779 = vmatpush1.msra.mxu0 %v649
        %780 = vmatprep.subr.mxu0 0.0
        %781 = vmatpush1.msra.mxu0 %v648
        %782 = vmatprep.subr.mxu0 0.0
        %783 = vmatpush1.msra.mxu0 %v647
        %784 = vmatprep.subr.mxu0 0.0
        %785 = vmatpush1.msra.mxu0 %v646
        %786 = vmatprep.subr.mxu0 0.0
        %787 = vmatpush1.msra.mxu0 %v645
        %788 = vmatprep.subr.mxu0 0.0
        %789 = vmatpush1.msra.mxu0 %v644
        %790 = vmatprep.subr.mxu0 0.0
        %791 = vmatpush2.msra.mxu0 %v675
        %792 = vmatprep.subr.mxu0 0.0
        %793 = vmatpush2.msra.mxu0 %v674
        %794 = vmatprep.subr.mxu0 0.0
        %795 = vmatpush2.msra.mxu0 %v673
        %796 = vmatprep.subr.mxu0 0.0
        %797 = vmatpush2.msra.mxu0 %v672
        %798 = vmatprep.subr.mxu0 0.0
        %799 = vmatpush2.msra.mxu0 %v671
        %800 = vmatprep.subr.mxu0 0.0
        %801 = vmatpush2.msra.mxu0 %v670
        %802 = vmatprep.subr.mxu0 0.0
        %803 = vmatpush2.msra.mxu0 %v669
        %804 = vmatprep.subr.mxu0 0.0
        %805 = vmatpush2.msra.mxu0 %v668
        %806 = vmatprep.subr.mxu0 0.0
        %807 = vmatpush2.msra.mxu0 %v667
        %808 = vmatprep.subr.mxu0 0.0
        %809 = vmatpush2.msra.mxu0 %v666
        %810 = vmatprep.subr.mxu0 0.0
        %811 = vmatpush2.msra.mxu0 %v665
        %812 = vmatprep.subr.mxu0 0.0
        %813 = vmatpush2.msra.mxu0 %v664
        %814 = vmatprep.subr.mxu0 0.0
        %815 = vmatpush2.msra.mxu0 %v663
        %816 = vmatprep.subr.mxu0 0.0
        %817 = vmatpush2.msra.mxu0 %v662
        %818 = vmatprep.subr.mxu0 0.0
        %819 = vmatpush2.msra.mxu0 %v661
        %820 = vmatprep.subr.mxu0 0.0
        %821 = vmatpush2.msra.mxu0 %v660
        %822 = vmatprep.mubr.f32.mxu0 %v602
        %823 = vmatmul.mubr.f32.gmra.mxu0 %v610
        %v824 = vpop.f32.mrf.mxu0
        %v825 = vadd.f32 %v750, %v824
        %v826 = vpop.f32.mrf.mxu0
        %827 = vmatprep.mubr.f32.mxu0 %v603
        %828 = vmatmul.mubr.f32.gmra.mxu0 %v611
        %v829 = vpop.f32.mrf.mxu0
        %v830 = vadd.f32 %v755, %v829
        %v831 = vpop.f32.mrf.mxu0
        %832 = vdwg.mxu0
        %v833 = vmax.f32 %v825, 0.0
        %v834 = vmax.f32 %v830, 0.0
        %v835 = vadd.f32 %v833, %v594
        %v836 = vadd.f32 %v834, %v600
        %v837 = vmax.f32 %v835, 0.0
        %v838 = vmax.f32 %v836, 0.0
        %839 = vst [vmem:[%s289] sm:$0xff] %v837
        %840 = vst [vmem:[%s289 + $0x8] sm:$0xff] %v838
        %p841 = scmp.lt.s32.totalorder %s28, 0
        // Predicated region
        $region57: #{tpu_custom_call.1} parent=39 // pred_check
          %p842 = pneg %p841
        $region58: #{tpu_custom_call.1} parent=39 // pred_check_branch
          %844 = sbr.rel (%p842) target = $region60
        $region59: #{tpu_custom_call.1} parent=39 // pred_region
          %v845 = vld [vmem:[#allocation2 + $0x10] sm:$0x3f]
          %846 = vst [vmem:[#allocation2] sm:$0x3f] %v845
          %v847 = vld [vmem:[#allocation3 + $0x10] sm:$0x3f]
          %848 = vst [vmem:[#allocation3] sm:$0x3f] %v847
        $region60: #{tpu_custom_call.1} parent=39 // pred_fallthru
          _
        %s849 = sand.u32 %s157, 1
        %s850 = scalar_lea.sflag [#allocation6], %s849
        %s851 = sand.u32 %s157, 1
        %s852 = smul.addr %s851, 16
        %s853 = scalar_lea.vmem [#allocation10], %s852
        // Predicated region
        $region61: #{tpu_custom_call.1} parent=39 // pred_check
          %p854 = pneg %p167
        $region62: #{tpu_custom_call.1} parent=39 // pred_check_branch
          %856 = sbr.rel (%p854) target = $region64
        $region63: #{tpu_custom_call.1} parent=39 // pred_region
          %s857 = smul.u32 2, %s28
          %s859 = ssub.s32 256, 256
          %860 = vsyncadd %s850, %s859
          %s861 = smul.addr %s27, 2
          %s862 = sadd.s32 %s857, %s861
          %s863 = smul.addr %s862, 128
          %s864 = scalar_lea.hbm %s5, %s863
          %s865 = sshll.u32 %s853, 4
          %s866 = int_to_ptr.vmem [resolvable:$true] %s865
          %871 = dma.vmem_to_hbm [thread:$0]  %s866, 256, %s864, %s850, 128, 128, 8
        $region64: #{tpu_custom_call.1} parent=39 // pred_fallthru
          _
      $region40: #{tpu_custom_call.1} parent=5 // pred_fallthru
        _
      %p872 = scmp.le.s32.totalorder 2, %s18
      // Predicated region
      $region65: #{tpu_custom_call.1} parent=5 // pred_check
        %p873 = pneg %p872
      $region66: #{tpu_custom_call.1} parent=5 // pred_check_branch
        %875 = sbr.rel (%p873) target = $region68
      $region67: #{tpu_custom_call.1} parent=5 // pred_region
        %s876 = ssub.s32 %s18, 2
        // Predicated region
        $region69: #{tpu_custom_call.1} parent=67 // pred_check
          %p877 = pneg %p173
        $region70: #{tpu_custom_call.1} parent=67 // pred_check_branch
          %879 = sbr.rel (%p877) target = $region72
        $region71: #{tpu_custom_call.1} parent=67 // pred_region
          %s880 = sand.u32 %s158, 1
          %s881 = scalar_lea.sflag [#allocation6], %s880
          %s882 = sand.u32 %s158, 1
          %s883 = smul.addr %s882, 16
          %s884 = scalar_lea.vmem [#allocation10], %s883
          %885 = dma.done %s881, 256
        $region72: #{tpu_custom_call.1} parent=67 // pred_fallthru
          _
      $region68: #{tpu_custom_call.1} parent=5 // pred_fallthru
        _
    $region6: #{tpu_custom_call.1} parent=1 // loop_footer
      %s22 = sadd.s32 1, %s18
    $region7: #{tpu_custom_call.1} parent=1 // loop_footer_branch
      %17 = sbr.rel target = $region3
    $region8: #{tpu_custom_call.1} parent=1 // loop_exit
      _
    %886 = vsyncpa [#allocation5], 1
    %s887 = scalar_lea.sflag [#allocation5], 1
    %888 = vsyncpa %s887, 1
    %889 = vsyncpa [#allocation8], 1
    %890 = vsyncpa [#allocation6], 1
    %s891 = scalar_lea.sflag [#allocation6], 1
    %892 = vsyncpa %s891, 1

</llo_original>
